<compile_context>
chip_gen: v5e
topology: v5e:2x2
jax: 0.10.0
libtpu: 0.0.40
codegen_flags: <defaults>
</compile_context>

<pallas_src>
import math
from collections import OrderedDict

import jax
import jax.numpy as jnp
from jax.experimental import pallas as pl
from jax.experimental.pallas import tpu as pltpu


# ---------------- synthetic GGConfig (deterministic, in-script) -------------
class _Calibrated:
    rescale = 2.0


class _CalibratedError:
    rescale = 0.1


class GGConfig:
    CALIBRATED = _Calibrated()
    CALIBRATED_ERROR = _CalibratedError()


_EPS = 1e-8  # PoissonNLLLoss-style protection for div/log at zero expected counts


# ---------------- tiling helpers ---------------------------------------------
def _choose_tiles(R, C, cap_bytes):
    """Row/column tiling for the fused sufficient-statistics kernel.

    Returns (TR, TC, CH, nb_r, nb_c) or None for degenerate shapes (R < 8),
    in which case the caller falls back to a plain-JAX reference.
      * TC: lane tile — a multiple of 128 (capped at 512) when C >= 128,
        otherwise the full (narrow) width, which is always a legal block dim.
      * TR: sublane tile — a multiple of CH, <= R, sized to ~cap_bytes per
        streamed f32 array (amortizes the ~0.35us per-grid-step overhead to
        <10% even at v7x HBM bandwidth) and split so that >=2 row blocks exist
        whenever possible (lets v7x's two TensorCores share the grid).
      * CH: rows per in-kernel fori_loop chunk (keeps temporaries tiny).
    """
    if C >= 128:
        TC = min(512, (C // 128) * 128)   # multiple of 128; ragged tail masked
    else:
        TC = C                            # full-dim block (legal for any width)
    nb_c = -(-C // TC)

    if R < 8:
        return None

    CH = 32 if R >= 32 else 8
    cap_rows = max(CH, (cap_bytes // (4 * TC)) // CH * CH)
    half_rows = max(CH, ((R // 2) // CH) * CH)      # aim for >=2 row blocks
    TR = min(cap_rows, half_rows, (R // CH) * CH)   # multiple of CH, <= R
    nb_r = -(-R // TR)
    return TR, TC, CH, nb_r, nb_c


# ---------------- fused sufficient-statistics kernel -------------------------
def _make_stats_kernel(P, R, C, TR, TC, CH):
    """Per-block partial sums of the Poisson-NLL sufficient statistics
         grad_i = sum A_i (1 - t/x),   H_ij = sum A_i A_j t/x^2.

    Refs: (x, t, A_1..A_P, out).  The out block is a lane-dense (NS*8, TC)
    slab of tile-aligned partials; the wrapper does the tiny final sum.
    """
    NS = P + P * (P + 1) // 2
    n_chunks = TR // CH
    mask_rows = (R % TR) != 0
    mask_cols = (C % TC) != 0

    def kernel(*refs):
        x_ref, t_ref = refs[0], refs[1]
        a_refs = refs[2:2 + P]
        out_ref = refs[2 + P]

        i = pl.program_id(0)
        j = pl.program_id(1)
        row_base = i * TR

        # Mask code is only emitted when the tiling is actually ragged.
        col_ok = None
        if mask_cols:
            col_ids = jax.lax.broadcasted_iota(jnp.int32, (CH, TC), 1) + j * TC
            col_ok = col_ids < C
        row_iota = None
        if mask_rows:
            row_iota = jax.lax.broadcasted_iota(jnp.int32, (CH, TC), 0)

        def red8(v):  # (CH, TC) -> (8, TC): static tile-aligned slices, pure VALU
            acc = v[0:8, :]
            for k in range(8, CH, 8):
                acc = acc + v[k:k + 8, :]
            return acc

        def body(c, accs):
            r0 = pl.multiple_of(c * CH, CH)
            ok = col_ok
            if mask_rows:
                rmask = (row_iota + (row_base + r0)) < R
                ok = rmask if ok is None else (ok & rmask)

            def ld(ref, fill):
                v = ref[pl.ds(r0, CH), :]
                if ok is not None:
                    # Sanitize BEFORE any arithmetic: out-of-range lanes of a
                    # partial block hold unspecified data.
                    v = jnp.where(ok, v, fill)
                return v

            x = ld(x_ref, 1.0)
            t = ld(t_ref, 0.0)
            a = [ld(ar, 0.0) for ar in a_refs]

            inv = 1.0 / (x + _EPS)       # eps-protected reciprocal
            r = t * inv                  # t / x
            w = 1.0 - r                  # d nll / d x
            q = r * inv                  # t / x^2  (Gauss-Hessian weight)

            parts = [a[p_] * w for p_ in range(P)]          # gradient stats
            for pi in range(P):                             # Hessian stats (upper tri)
                aq = a[pi] * q
                for pj in range(pi, P):
                    parts.append(a[pj] * aq)

            return tuple(acc + red8(v) for acc, v in zip(accs, parts))

        init = tuple(jnp.zeros((8, TC), jnp.float32) for _ in range(NS))
        accs = jax.lax.fori_loop(0, n_chunks, body, init)

        for s in range(NS):  # lane-dense, tile-aligned, unmasked stores
            out_ref[0, 0, s * 8:(s + 1) * 8, :] = accs[s]

    return kernel


def _gg_stats_ref(x, t, a_list):
    """Plain-JAX reference / fallback for the fused sufficient statistics."""
    inv = 1.0 / (x + _EPS)
    r = t * inv
    w = 1.0 - r
    q = r * inv
    P = len(a_list)
    grad = jnp.stack([jnp.sum(a_list[i] * w) for i in range(P)])
    hess = jnp.stack(
        [jnp.stack([jnp.sum(a_list[i] * a_list[j] * q) for j in range(P)])
         for i in range(P)])
    return grad, hess


def gg_hessian_stats(x, target, a_list):
    """One fused Pallas streaming pass over (x, target, A_1..A_P) returning
    (grad (P,), gauss_hessian (P,P)) of the Poisson NLL core sum(x - t*log x)."""
    P = len(a_list)
    R, C = x.shape
    n_streams = 2 + P
    # ~24 MiB total of double-buffered input blocks, regardless of P.
    cap_bytes = max(1 << 20, (12 << 20) // n_streams)
    tiles = _choose_tiles(R, C, cap_bytes)
    x32 = x.astype(jnp.float32)
    t32 = target.astype(jnp.float32)
    a32 = [a.astype(jnp.float32) for a in a_list]
    if tiles is None:     # degenerate shapes: tiny, do it in plain JAX
        return _gg_stats_ref(x32, t32, a32)
    TR, TC, CH, nb_r, nb_c = tiles
    NS = P + P * (P + 1) // 2

    # TODO(synk): the pass is HBM-bound; streaming inputs as bf16 with f32
    # in-kernel accumulation would be a further ~2x (validate numerics first).
    spec = pl.BlockSpec((TR, TC), lambda i, j: (i, j))
    partials = pl.pallas_call(
        _make_stats_kernel(P, R, C, TR, TC, CH),
        out_shape=jax.ShapeDtypeStruct((nb_r, nb_c, NS * 8, TC), jnp.float32),
        grid_spec=pltpu.PrefetchScalarGridSpec(
            num_scalar_prefetch=0,
            grid=(nb_r, nb_c),
            in_specs=[spec] * n_streams,
            out_specs=pl.BlockSpec((1, 1, NS * 8, TC), lambda i, j: (i, j, 0, 0)),
        ),
        compiler_params=pltpu.CompilerParams(
            dimension_semantics=("parallel", "parallel"),
            # ~24 MiB of input double-buffers + slack; explicit so the same
            # tiling is safe on v5e (16 MiB scoped default), v6e and v7x
            # (64 MiB physical) alike.
            vmem_limit_bytes=40 << 20,
        ),
    )(x32, t32, *a32)

    stats = jnp.sum(partials.reshape(nb_r, nb_c, NS, 8, TC), axis=(0, 1, 3, 4))

    grad = stats[:P]
    rows = [[None] * P for _ in range(P)]
    idx = P
    for pi in range(P):
        for pj in range(pi, P):
            rows[pi][pj] = stats[idx]
            rows[pj][pi] = stats[idx]
            idx += 1
    hess = jnp.stack([jnp.stack(row) for row in rows])
    return grad, hess


# ---------------- GGLoss ------------------------------------------------------
class GGLoss:
    """JAX/Pallas port of the PyTorch GGLoss forward pass.

    forward(input_fn, target, params): `input_fn(params)` plays the role of the
    autograd graph that carries `input` back to `params` in the PyTorch
    version; the returned loss is h^{-1}[0,0] with h the Hessian of the
    (Poisson + constraints) NLL w.r.t. the parameters, exactly as in torch.
    """

    def __init__(self, assume_affine_input=True):
        config = GGConfig()
        self.rescale_loc = jnp.float32(config.CALIBRATED.rescale)
        self.rescale_std = jnp.float32(config.CALIBRATED_ERROR.rescale)
        # The Gamma-Gauss model is affine in (mu, rescale); with this flag the
        # (identically zero) second-order input term is skipped so the whole
        # Hessian needs a single streaming pass over HBM.
        self.assume_affine_input = assume_affine_input
        self.i = 0

    def constraints_nll(self, params):
        nll = jnp.float32(0.0)
        if "rescale" in params:
            r = params["rescale"]
            # -Normal(loc, std).log_prob(r)
            nll = nll + (
                0.5 * ((r - self.rescale_loc) / self.rescale_std) ** 2
                + jnp.log(self.rescale_std)
                + 0.5 * jnp.log(jnp.float32(2.0 * math.pi))
            )
        return nll

    def forward(self, input_fn, target, params):
        keys = list(params.keys())
        P = len(keys)
        vec = jnp.stack([jnp.asarray(v, jnp.float32) for v in params.values()])
        target = jnp.asarray(target, jnp.float32)

        def input_vec(v):
            p = OrderedDict((k, v[idx]) for idx, k in enumerate(keys))
            return input_fn(p)

        # Expected counts x and per-parameter sensitivities A_i = dx/dp_i
        # (parameter-independent templates for the affine Gamma-Gauss model).
        x = input_vec(vec)
        eye = jnp.eye(P, dtype=jnp.float32)
        a_list = [jax.jvp(input_vec, (vec,), (eye[i],))[1] for i in range(P)]

        # Single fused Pallas pass: Poisson-NLL gradient + Gauss Hessian.
        # (The gradient comes for free in the same pass; it is not needed for
        # the returned loss but is handy for fit diagnostics.)
        grad_pois, hess_pois = gg_hessian_stats(x, target, a_list)
        self.last_grad = grad_pois

        # Constraint (Gaussian prior) curvature: tiny scalar autodiff graph.
        def cons_fn(v):
            p = OrderedDict((k, v[idx]) for idx, k in enumerate(keys))
            return self.constraints_nll(p)

        hess = hess_pois + jax.hessian(cons_fn)(vec)

        if not self.assume_affine_input:
            # Exact extra term sum_e (1 - t/x)_e * d^2 x_e / dp_i dp_j for a
            # non-affine input model (identically zero for Gamma-Gauss).
            w = jax.lax.stop_gradient(1.0 - target / (x + _EPS))
            hess = hess + jax.hessian(lambda v: jnp.vdot(w, input_vec(v)))(vec)

        # The parameter-independent lgamma(target+1) piece of the Poisson NLL
        # contributes nothing to the Hessian and is dropped entirely; the
        # returned loss h^{-1}[0,0] is identical to the torch reference.
        # TODO(synk): differentiating this loss w.r.t. upstream (network)
        # parameters, as torch's create_graph=True allows, would need custom
        # JVP/VJP rules on gg_hessian_stats.
        h_inverse = jnp.linalg.inv(hess)   # tiny PxP: plain JAX
        loss = h_inverse[0, 0]
        return loss

    __call__ = forward


# ---------------- demo --------------------------------------------------------
if __name__ == "__main__":
    R, C = 64, 128
    key = jax.random.PRNGKey(0)
    k1, k2 = jax.random.split(key)
    sig_template = jax.random.uniform(k1, (R, C), jnp.float32, 0.5, 2.0)
    bkg_template = jax.random.uniform(k2, (R, C), jnp.float32, 5.0, 10.0)

    # Differentiable model producing `input` (expected counts) from params.
    def input_fn(p):
        return p["mu"] * sig_template + p["rescale"] * bkg_template

    params = OrderedDict(rescale=jnp.float32(2.0), mu=jnp.float32(1.0))
    target = input_fn(params)  # asimov: expected counts at nominal parameters

    loss_module = GGLoss()
    loss = loss_module(input_fn, target, params)
    jax.block_until_ready(loss)
    assert bool(jnp.isfinite(loss))

    # Self-check: fused Pallas sufficient statistics vs. plain-JAX reference.
    a_list = [bkg_template, sig_template]   # dx/d rescale, dx/d mu
    g_k, h_k = gg_hessian_stats(target, target, a_list)
    g_r, h_r = _gg_stats_ref(target, target, a_list)
    assert bool(jnp.allclose(g_k, g_r, rtol=1e-4, atol=1e-3))
    assert bool(jnp.allclose(h_k, h_r, rtol=1e-4, atol=1e-3))

    print("KERNEL_OK")
</pallas_src>

<mosaic_0001>
module attributes {stable_mosaic.version = 11 : i64} {
  func.func @kernel(%arg0: i32, %arg1: i32, %arg2: memref<32x128xf32, #tpu.memory_space<vmem>>, %arg3: memref<32x128xf32, #tpu.memory_space<vmem>>, %arg4: memref<32x128xf32, #tpu.memory_space<vmem>>, %arg5: memref<32x128xf32, #tpu.memory_space<vmem>>, %arg6: memref<1x1x40x128xf32, #tpu.memory_space<vmem>>) attributes {dimension_semantics = [#tpu.dimension_semantics<parallel>, #tpu.dimension_semantics<parallel>], iteration_bounds = array<i64: 2, 1>, scalar_prefetch = 0 : i64, scratch_operands = 0 : i64, tpu.core_type = #tpu.core_type<tc>, window_params = [{transform_indices = @transform_0, window_bounds = array<i64: 32, 128>}, {transform_indices = @transform_1, window_bounds = array<i64: 32, 128>}, {transform_indices = @transform_2, window_bounds = array<i64: 32, 128>}, {transform_indices = @transform_3, window_bounds = array<i64: 32, 128>}, {transform_indices = @transform_4, window_bounds = array<i64: 1, 1, 40, 128>}]} {
    %cst = arith.constant 0.000000e+00 : f32
    %0 = vector.broadcast %cst : f32 to vector<8x128xf32>
    %cst_0 = arith.constant 0.000000e+00 : f32
    %1 = vector.broadcast %cst_0 : f32 to vector<8x128xf32>
    %cst_1 = arith.constant 0.000000e+00 : f32
    %2 = vector.broadcast %cst_1 : f32 to vector<8x128xf32>
    %cst_2 = arith.constant 0.000000e+00 : f32
    %3 = vector.broadcast %cst_2 : f32 to vector<8x128xf32>
    %cst_3 = arith.constant 0.000000e+00 : f32
    %4 = vector.broadcast %cst_3 : f32 to vector<8x128xf32>
    %c0_i32 = arith.constant 0 : i32
    %c32_i32 = arith.constant 32 : i32
    %5 = arith.muli %c0_i32, %c32_i32 : i32
    %6 = tpu.assume_multiple %5, 32 : i32
    %7 = arith.index_cast %6 : i32 to index
    %c0 = arith.constant 0 : index
    %8 = vector.load %arg2[%7, %c0] : memref<32x128xf32, #tpu.memory_space<vmem>>, vector<32x128xf32>
    %9 = arith.index_cast %6 : i32 to index
    %c0_4 = arith.constant 0 : index
    %10 = vector.load %arg3[%9, %c0_4] : memref<32x128xf32, #tpu.memory_space<vmem>>, vector<32x128xf32>
    %11 = arith.index_cast %6 : i32 to index
    %c0_5 = arith.constant 0 : index
    %12 = vector.load %arg4[%11, %c0_5] : memref<32x128xf32, #tpu.memory_space<vmem>>, vector<32x128xf32>
    %13 = arith.index_cast %6 : i32 to index
    %c0_6 = arith.constant 0 : index
    %14 = vector.load %arg5[%13, %c0_6] : memref<32x128xf32, #tpu.memory_space<vmem>>, vector<32x128xf32>
    %cst_7 = arith.constant 9.99999993E-9 : f32
    %15 = vector.broadcast %cst_7 : f32 to vector<32x128xf32>
    %16 = arith.addf %8, %15 : vector<32x128xf32>
    %cst_8 = arith.constant 1.000000e+00 : f32
    %17 = vector.broadcast %cst_8 : f32 to vector<32x128xf32>
    %18 = arith.divf %17, %16 : vector<32x128xf32>
    %19 = arith.mulf %10, %18 : vector<32x128xf32>
    %cst_9 = arith.constant 1.000000e+00 : f32
    %20 = vector.broadcast %cst_9 : f32 to vector<32x128xf32>
    %21 = arith.subf %20, %19 : vector<32x128xf32>
    %22 = arith.mulf %19, %18 : vector<32x128xf32>
    %23 = arith.mulf %12, %21 : vector<32x128xf32>
    %24 = arith.mulf %14, %21 : vector<32x128xf32>
    %25 = arith.mulf %12, %22 : vector<32x128xf32>
    %26 = arith.mulf %12, %25 : vector<32x128xf32>
    %27 = arith.mulf %14, %25 : vector<32x128xf32>
    %28 = arith.mulf %14, %22 : vector<32x128xf32>
    %29 = arith.mulf %14, %28 : vector<32x128xf32>
    %30 = vector.extract_strided_slice %23 {offsets = [0, 0], sizes = [8, 128], strides = [1, 1]} : vector<32x128xf32> to vector<8x128xf32>
    %31 = vector.extract_strided_slice %23 {offsets = [8, 0], sizes = [8, 128], strides = [1, 1]} : vector<32x128xf32> to vector<8x128xf32>
    %32 = arith.addf %30, %31 : vector<8x128xf32>
    %33 = vector.extract_strided_slice %23 {offsets = [16, 0], sizes = [8, 128], strides = [1, 1]} : vector<32x128xf32> to vector<8x128xf32>
    %34 = arith.addf %32, %33 : vector<8x128xf32>
    %35 = vector.extract_strided_slice %23 {offsets = [24, 0], sizes = [8, 128], strides = [1, 1]} : vector<32x128xf32> to vector<8x128xf32>
    %36 = arith.addf %34, %35 : vector<8x128xf32>
    %37 = arith.addf %0, %36 : vector<8x128xf32>
    %38 = vector.extract_strided_slice %24 {offsets = [0, 0], sizes = [8, 128], strides = [1, 1]} : vector<32x128xf32> to vector<8x128xf32>
    %39 = vector.extract_strided_slice %24 {offsets = [8, 0], sizes = [8, 128], strides = [1, 1]} : vector<32x128xf32> to vector<8x128xf32>
    %40 = arith.addf %38, %39 : vector<8x128xf32>
    %41 = vector.extract_strided_slice %24 {offsets = [16, 0], sizes = [8, 128], strides = [1, 1]} : vector<32x128xf32> to vector<8x128xf32>
    %42 = arith.addf %40, %41 : vector<8x128xf32>
    %43 = vector.extract_strided_slice %24 {offsets = [24, 0], sizes = [8, 128], strides = [1, 1]} : vector<32x128xf32> to vector<8x128xf32>
    %44 = arith.addf %42, %43 : vector<8x128xf32>
    %45 = arith.addf %1, %44 : vector<8x128xf32>
    %46 = vector.extract_strided_slice %26 {offsets = [0, 0], sizes = [8, 128], strides = [1, 1]} : vector<32x128xf32> to vector<8x128xf32>
    %47 = vector.extract_strided_slice %26 {offsets = [8, 0], sizes = [8, 128], strides = [1, 1]} : vector<32x128xf32> to vector<8x128xf32>
    %48 = arith.addf %46, %47 : vector<8x128xf32>
    %49 = vector.extract_strided_slice %26 {offsets = [16, 0], sizes = [8, 128], strides = [1, 1]} : vector<32x128xf32> to vector<8x128xf32>
    %50 = arith.addf %48, %49 : vector<8x128xf32>
    %51 = vector.extract_strided_slice %26 {offsets = [24, 0], sizes = [8, 128], strides = [1, 1]} : vector<32x128xf32> to vector<8x128xf32>
    %52 = arith.addf %50, %51 : vector<8x128xf32>
    %53 = arith.addf %2, %52 : vector<8x128xf32>
    %54 = vector.extract_strided_slice %27 {offsets = [0, 0], sizes = [8, 128], strides = [1, 1]} : vector<32x128xf32> to vector<8x128xf32>
    %55 = vector.extract_strided_slice %27 {offsets = [8, 0], sizes = [8, 128], strides = [1, 1]} : vector<32x128xf32> to vector<8x128xf32>
    %56 = arith.addf %54, %55 : vector<8x128xf32>
    %57 = vector.extract_strided_slice %27 {offsets = [16, 0], sizes = [8, 128], strides = [1, 1]} : vector<32x128xf32> to vector<8x128xf32>
    %58 = arith.addf %56, %57 : vector<8x128xf32>
    %59 = vector.extract_strided_slice %27 {offsets = [24, 0], sizes = [8, 128], strides = [1, 1]} : vector<32x128xf32> to vector<8x128xf32>
    %60 = arith.addf %58, %59 : vector<8x128xf32>
    %61 = arith.addf %3, %60 : vector<8x128xf32>
    %62 = vector.extract_strided_slice %29 {offsets = [0, 0], sizes = [8, 128], strides = [1, 1]} : vector<32x128xf32> to vector<8x128xf32>
    %63 = vector.extract_strided_slice %29 {offsets = [8, 0], sizes = [8, 128], strides = [1, 1]} : vector<32x128xf32> to vector<8x128xf32>
    %64 = arith.addf %62, %63 : vector<8x128xf32>
    %65 = vector.extract_strided_slice %29 {offsets = [16, 0], sizes = [8, 128], strides = [1, 1]} : vector<32x128xf32> to vector<8x128xf32>
    %66 = arith.addf %64, %65 : vector<8x128xf32>
    %67 = vector.extract_strided_slice %29 {offsets = [24, 0], sizes = [8, 128], strides = [1, 1]} : vector<32x128xf32> to vector<8x128xf32>
    %68 = arith.addf %66, %67 : vector<8x128xf32>
    %69 = arith.addf %4, %68 : vector<8x128xf32>
    %c1_i32 = arith.constant 1 : i32
    %c0_10 = arith.constant 0 : index
    %c0_11 = arith.constant 0 : index
    %c0_12 = arith.constant 0 : index
    %c0_13 = arith.constant 0 : index
    %70 = vector.load %arg6[%c0_10, %c0_11, %c0_12, %c0_13] : memref<1x1x40x128xf32, #tpu.memory_space<vmem>>, vector<1x1x8x128xf32>
    %71 = vector.shape_cast %70 : vector<1x1x8x128xf32> to vector<8x128xf32>
    %72 = vector.shape_cast %37 : vector<8x128xf32> to vector<1x1x8x128xf32>
    tpu.vector_store %arg6[%c0_10, %c0_11, %c0_12, %c0_13], %72 {strides = array<i32>} : memref<1x1x40x128xf32, #tpu.memory_space<vmem>>, vector<1x1x8x128xf32>,
    %c0_14 = arith.constant 0 : index
    %c0_15 = arith.constant 0 : index
    %c8 = arith.constant 8 : index
    %c0_16 = arith.constant 0 : index
    %73 = vector.load %arg6[%c0_14, %c0_15, %c8, %c0_16] : memref<1x1x40x128xf32, #tpu.memory_space<vmem>>, vector<1x1x8x128xf32>
    %74 = vector.shape_cast %73 : vector<1x1x8x128xf32> to vector<8x128xf32>
    %75 = vector.shape_cast %45 : vector<8x128xf32> to vector<1x1x8x128xf32>
    tpu.vector_store %arg6[%c0_14, %c0_15, %c8, %c0_16], %75 {strides = array<i32>} : memref<1x1x40x128xf32, #tpu.memory_space<vmem>>, vector<1x1x8x128xf32>,
    %c0_17 = arith.constant 0 : index
    %c0_18 = arith.constant 0 : index
    %c16 = arith.constant 16 : index
    %c0_19 = arith.constant 0 : index
    %76 = vector.load %arg6[%c0_17, %c0_18, %c16, %c0_19] : memref<1x1x40x128xf32, #tpu.memory_space<vmem>>, vector<1x1x8x128xf32>
    %77 = vector.shape_cast %76 : vector<1x1x8x128xf32> to vector<8x128xf32>
    %78 = vector.shape_cast %53 : vector<8x128xf32> to vector<1x1x8x128xf32>
    tpu.vector_store %arg6[%c0_17, %c0_18, %c16, %c0_19], %78 {strides = array<i32>} : memref<1x1x40x128xf32, #tpu.memory_space<vmem>>, vector<1x1x8x128xf32>,
    %c0_20 = arith.constant 0 : index
    %c0_21 = arith.constant 0 : index
    %c24 = arith.constant 24 : index
    %c0_22 = arith.constant 0 : index
    %79 = vector.load %arg6[%c0_20, %c0_21, %c24, %c0_22] : memref<1x1x40x128xf32, #tpu.memory_space<vmem>>, vector<1x1x8x128xf32>
    %80 = vector.shape_cast %79 : vector<1x1x8x128xf32> to vector<8x128xf32>
    %81 = vector.shape_cast %61 : vector<8x128xf32> to vector<1x1x8x128xf32>
    tpu.vector_store %arg6[%c0_20, %c0_21, %c24, %c0_22], %81 {strides = array<i32>} : memref<1x1x40x128xf32, #tpu.memory_space<vmem>>, vector<1x1x8x128xf32>,
    %c0_23 = arith.constant 0 : index
    %c0_24 = arith.constant 0 : index
    %c32 = arith.constant 32 : index
    %c0_25 = arith.constant 0 : index
    %82 = vector.load %arg6[%c0_23, %c0_24, %c32, %c0_25] : memref<1x1x40x128xf32, #tpu.memory_space<vmem>>, vector<1x1x8x128xf32>
    %83 = vector.shape_cast %82 : vector<1x1x8x128xf32> to vector<8x128xf32>
    %84 = vector.shape_cast %69 : vector<8x128xf32> to vector<1x1x8x128xf32>
    tpu.vector_store %arg6[%c0_23, %c0_24, %c32, %c0_25], %84 {strides = array<i32>} : memref<1x1x40x128xf32, #tpu.memory_space<vmem>>, vector<1x1x8x128xf32>,
    return
  }
  func.func @transform_0(%arg0: i32, %arg1: i32) -> (i32, i32) {
    %c0_i32 = arith.constant 0 : i32
    return %arg0, %arg1 : i32, i32
  }
  func.func @transform_1(%arg0: i32, %arg1: i32) -> (i32, i32) {
    %c0_i32 = arith.constant 0 : i32
    return %arg0, %arg1 : i32, i32
  }
  func.func @transform_2(%arg0: i32, %arg1: i32) -> (i32, i32) {
    %c0_i32 = arith.constant 0 : i32
    return %arg0, %arg1 : i32, i32
  }
  func.func @transform_3(%arg0: i32, %arg1: i32) -> (i32, i32) {
    %c0_i32 = arith.constant 0 : i32
    return %arg0, %arg1 : i32, i32
  }
  func.func @transform_4(%arg0: i32, %arg1: i32) -> (i32, i32, i32, i32) {
    %c0_i32 = arith.constant 0 : i32
    %c0_i32_0 = arith.constant 0 : i32
    %c0_i32_1 = arith.constant 0 : i32
    return %arg0, %arg1, %c0_i32, %c0_i32_0 : i32, i32, i32, i32
  }
}

</mosaic_0001>

<llo_original>
// kernel: tpu_custom_call.1
$region0: #{tpu_custom_call.1}
  #allocation0 [shape = 'u32[]', space=smem, size = 0x4, offset = 0x4, fixed_abs, tag = 'smem constant byte address 0x4 - core index']
  #allocation1 [shape = 'u32[72,128]{1,0:T(1,128)}', space=vmem, size = 0x9000, scoped, tag = 'internal scratch']
  %s0 = inlined_call_operand.hbm [shape: f32[64,128], index: 0, kind: input, shape index: {}]
  %s1 = inlined_call_operand.hbm [shape: f32[64,128], index: 1, kind: input, shape index: {}]
  %s2 = inlined_call_operand.hbm [shape: f32[64,128], index: 2, kind: input, shape index: {}]
  %s3 = inlined_call_operand.hbm [shape: f32[64,128], index: 3, kind: input, shape index: {}]
  %s4 = inlined_call_operand.hbm [shape: f32[2,1,40,128], index: 4, kind: output, shape index: {}]
  %s5 = sld [smem:[#allocation0]]
  $region65: #{tpu_custom_call.1} parent=0
    _
  %s7 = ssub.s32 1, %s5
  %s8 = scalar_select 0, %s7, %s5
  $region1: #{tpu_custom_call.1} parent=0
    #allocation2 [shape = 'u8[32768]{0}', space=vmem, size = 0x8000, scoped, tag = 'input window, operand 0']
    #allocation3 [shape = 's32[2]{0}', space=sflag, size = 0x8, scoped, tag = 'scoped memory for tpu_custom_call.1']
    #allocation4 [shape = 's32[2]{0}', space=sflag, size = 0x8, scoped, tag = 'scoped memory for tpu_custom_call.1']
    #allocation5 [shape = 'u8[32768]{0}', space=vmem, size = 0x8000, scoped, tag = 'input window, operand 1']
    #allocation6 [shape = 's32[2]{0}', space=sflag, size = 0x8, scoped, tag = 'scoped memory for tpu_custom_call.1']
    #allocation7 [shape = 'u8[32768]{0}', space=vmem, size = 0x8000, scoped, tag = 'input window, operand 2']
    #allocation8 [shape = 'u8[32768]{0}', space=vmem, size = 0x8000, scoped, tag = 'input window, operand 3']
    #allocation9 [shape = 's32[2]{0}', space=sflag, size = 0x8, scoped, tag = 'scoped memory for tpu_custom_call.1']
    #allocation10 [shape = 'u8[40960]{0}', space=vmem, size = 0xa000, scoped, tag = 'output window, operand 0']
    %9 = vsyncpa [#allocation3], 0
    %s10 = scalar_lea.sflag [#allocation3], 1
    %11 = vsyncpa %s10, 0
    %12 = vsyncpa [#allocation6], 0
    %s13 = scalar_lea.sflag [#allocation6], 1
    %14 = vsyncpa %s13, 0
    %15 = vsyncpa [#allocation9], 0
    %s16 = scalar_lea.sflag [#allocation9], 1
    %17 = vsyncpa %s16, 0
    %18 = vsyncpa [#allocation4], 0
    %s19 = scalar_lea.sflag [#allocation4], 1
    %20 = vsyncpa %s19, 0
    loop: start=0, step=1, limit=4
    $region2: #{tpu_custom_call.1} parent=1 // loop_pre_header
      _
    $region3: #{tpu_custom_call.1} parent=1 // loop_header
      %s22 = sphi 0, %s26
      %p23 = scmp.ge.s32.totalorder %s22, 4
      %s29 = sphi 0, %s41
      %s30 = sphi 0, %s37
      %s31 = sphi 0, %s29
      %s32 = sphi 0, %s30
      %s33 = sphi 0, %s31
      %s34 = sphi 0, %s32
      %s46 = sphi 0, %s48
      %s49 = sphi 0, %s46
      %s50 = sphi 0, %s49
      %s66 = sphi 0, %s50
      %s74 = sphi 0, %s76
      %s77 = sphi 0, %s74
      %s78 = sphi 0, %s77
      %s94 = sphi 0, %s78
      %s102 = sphi 0, %s104
      %s105 = sphi 0, %s102
      %s106 = sphi 0, %s105
      %s122 = sphi 0, %s106
      %s130 = sphi 0, %s132
      %s133 = sphi 0, %s130
      %s134 = sphi 0, %s133
      %s150 = sphi 0, %s134
      %s158 = sphi 0, %s160
      %s161 = sphi 0, %s158
      %s162 = sphi 0, %s161
      %s178 = sphi 0, %s162
    $region4: #{tpu_custom_call.1} parent=1 // loop_header_branch
      %25 = sbr.rel (%p23) target = $region8
    $region5: #{tpu_custom_call.1} parent=1 // loop_body
      %s27 = ssub.s32 %s22, 1
      %s28 = ssub.s32 %s22, 2
      %s35 = sadd.s32 1, %s30
      %p36 = scmp.ge.s32.totalorder %s35, 1
      %s37 = scalar_select %p36, 0, %s35
      %s38 = sadd.s32 1, %s29
      %s39 = scalar_select %p36, %s38, %s29
      %p40 = scmp.ge.s32.totalorder %s39, 2
      %s41 = scalar_select %p40, 0, %s39
      %s42 = ssub.s32 %s29, %s41
      %s43 = ssub.s32 %s30, %s37
      %s44 = sor.u32 %s42, %s43
      %p45 = scmp.eq.s32.totalorder %s44, 0
      %s47 = sadd.s32 %s46, 1
      %s48 = scalar_select %p45, %s46, %s47
      %p51 = pneg %p45
      %p52 = scmp.eq.s32.totalorder %s22, 1
      %p53 = por %p51, %p52
      %p54 = scmp.ne.s32.totalorder %s46, %s49
      %p55 = scmp.eq.s32.totalorder %s22, 0
      %p56 = por %p54, %p55
      %p57 = scmp.ne.s32.totalorder %s46, %s49
      %p58 = scmp.eq.s32.totalorder %s27, 1
      %p59 = por %p57, %p58
      %p60 = scmp.ne.s32.totalorder %s49, %s50
      %p61 = scmp.eq.s32.totalorder %s27, 0
      %p62 = por %p60, %p61
      %p63 = scmp.ne.s32.totalorder %s49, %s50
      %p64 = scmp.eq.s32.totalorder %s28, 1
      %p65 = por %p63, %p64
      %p67 = scmp.ne.s32.totalorder %s50, %s66
      %p68 = scmp.eq.s32.totalorder %s28, 0
      %p69 = por %p67, %p68
      %s70 = ssub.s32 %s29, %s41
      %s71 = ssub.s32 %s30, %s37
      %s72 = sor.u32 %s70, %s71
      %p73 = scmp.eq.s32.totalorder %s72, 0
      %s75 = sadd.s32 %s74, 1
      %s76 = scalar_select %p73, %s74, %s75
      %p79 = pneg %p73
      %p80 = scmp.eq.s32.totalorder %s22, 1
      %p81 = por %p79, %p80
      %p82 = scmp.ne.s32.totalorder %s74, %s77
      %p83 = scmp.eq.s32.totalorder %s22, 0
      %p84 = por %p82, %p83
      %p85 = scmp.ne.s32.totalorder %s74, %s77
      %p86 = scmp.eq.s32.totalorder %s27, 1
      %p87 = por %p85, %p86
      %p88 = scmp.ne.s32.totalorder %s77, %s78
      %p89 = scmp.eq.s32.totalorder %s27, 0
      %p90 = por %p88, %p89
      %p91 = scmp.ne.s32.totalorder %s77, %s78
      %p92 = scmp.eq.s32.totalorder %s28, 1
      %p93 = por %p91, %p92
      %p95 = scmp.ne.s32.totalorder %s78, %s94
      %p96 = scmp.eq.s32.totalorder %s28, 0
      %p97 = por %p95, %p96
      %s98 = ssub.s32 %s29, %s41
      %s99 = ssub.s32 %s30, %s37
      %s100 = sor.u32 %s98, %s99
      %p101 = scmp.eq.s32.totalorder %s100, 0
      %s103 = sadd.s32 %s102, 1
      %s104 = scalar_select %p101, %s102, %s103
      %p107 = pneg %p101
      %p108 = scmp.eq.s32.totalorder %s22, 1
      %p109 = por %p107, %p108
      %p110 = scmp.ne.s32.totalorder %s102, %s105
      %p111 = scmp.eq.s32.totalorder %s22, 0
      %p112 = por %p110, %p111
      %p113 = scmp.ne.s32.totalorder %s102, %s105
      %p114 = scmp.eq.s32.totalorder %s27, 1
      %p115 = por %p113, %p114
      %p116 = scmp.ne.s32.totalorder %s105, %s106
      %p117 = scmp.eq.s32.totalorder %s27, 0
      %p118 = por %p116, %p117
      %p119 = scmp.ne.s32.totalorder %s105, %s106
      %p120 = scmp.eq.s32.totalorder %s28, 1
      %p121 = por %p119, %p120
      %p123 = scmp.ne.s32.totalorder %s106, %s122
      %p124 = scmp.eq.s32.totalorder %s28, 0
      %p125 = por %p123, %p124
      %s126 = ssub.s32 %s29, %s41
      %s127 = ssub.s32 %s30, %s37
      %s128 = sor.u32 %s126, %s127
      %p129 = scmp.eq.s32.totalorder %s128, 0
      %s131 = sadd.s32 %s130, 1
      %s132 = scalar_select %p129, %s130, %s131
      %p135 = pneg %p129
      %p136 = scmp.eq.s32.totalorder %s22, 1
      %p137 = por %p135, %p136
      %p138 = scmp.ne.s32.totalorder %s130, %s133
      %p139 = scmp.eq.s32.totalorder %s22, 0
      %p140 = por %p138, %p139
      %p141 = scmp.ne.s32.totalorder %s130, %s133
      %p142 = scmp.eq.s32.totalorder %s27, 1
      %p143 = por %p141, %p142
      %p144 = scmp.ne.s32.totalorder %s133, %s134
      %p145 = scmp.eq.s32.totalorder %s27, 0
      %p146 = por %p144, %p145
      %p147 = scmp.ne.s32.totalorder %s133, %s134
      %p148 = scmp.eq.s32.totalorder %s28, 1
      %p149 = por %p147, %p148
      %p151 = scmp.ne.s32.totalorder %s134, %s150
      %p152 = scmp.eq.s32.totalorder %s28, 0
      %p153 = por %p151, %p152
      %s154 = ssub.s32 %s29, %s41
      %s155 = ssub.s32 %s30, %s37
      %s156 = sor.u32 %s154, %s155
      %p157 = scmp.eq.s32.totalorder %s156, 0
      %s159 = sadd.s32 %s158, 1
      %s160 = scalar_select %p157, %s158, %s159
      %p163 = pneg %p157
      %p164 = scmp.eq.s32.totalorder %s22, 1
      %p165 = por %p163, %p164
      %p166 = scmp.ne.s32.totalorder %s158, %s161
      %p167 = scmp.eq.s32.totalorder %s22, 0
      %p168 = por %p166, %p167
      %p169 = scmp.ne.s32.totalorder %s158, %s161
      %p170 = scmp.eq.s32.totalorder %s27, 1
      %p171 = por %p169, %p170
      %p172 = scmp.ne.s32.totalorder %s161, %s162
      %p173 = scmp.eq.s32.totalorder %s27, 0
      %p174 = por %p172, %p173
      %p175 = scmp.ne.s32.totalorder %s161, %s162
      %p176 = scmp.eq.s32.totalorder %s28, 1
      %p177 = por %p175, %p176
      %p179 = scmp.ne.s32.totalorder %s162, %s178
      %p180 = scmp.eq.s32.totalorder %s28, 0
      %p181 = por %p179, %p180
      %p182 = scmp.le.s32.totalorder 1, %s22
      %p183 = scmp.lt.s32.totalorder %s22, 3
      %p184 = pnand %p182, %p183
      %p185 = pneg %p184
      // Predicated region
      $region9: #{tpu_custom_call.1} parent=5 // pred_check
        _
      $region10: #{tpu_custom_call.1} parent=5 // pred_check_branch
        %187 = sbr.rel (%p184) target = $region12
      $region11: #{tpu_custom_call.1} parent=5 // pred_region
        %s188 = ssub.s32 %s22, 1
      $region12: #{tpu_custom_call.1} parent=5 // pred_fallthru
        _
      %p189 = scmp.lt.s32.totalorder %s22, 2
      // Predicated region
      $region13: #{tpu_custom_call.1} parent=5 // pred_check
        %p190 = pneg %p189
      $region14: #{tpu_custom_call.1} parent=5 // pred_check_branch
        %192 = sbr.rel (%p190) target = $region16
      $region15: #{tpu_custom_call.1} parent=5 // pred_region
        // Predicated region
        $region17: #{tpu_custom_call.1} parent=15 // pred_check
          %p193 = pneg %p56
        $region18: #{tpu_custom_call.1} parent=15 // pred_check_branch
          %195 = sbr.rel (%p193) target = $region20
        $region19: #{tpu_custom_call.1} parent=15 // pred_region
          %s196 = sand.u32 %s46, 1
          %s197 = scalar_lea.sflag [#allocation3], %s196
          %s198 = sand.u32 %s46, 1
          %s199 = smul.addr %s198, 32
          %s200 = scalar_lea.vmem [#allocation2], %s199
          %s201 = smul.u32 4, %s29
          %203 = vsyncadd %s197, 0
          %s204 = sadd.s32 %s30, %s201
          %s205 = smul.addr %s204, 8
          %s206 = scalar_lea.hbm %s0, %s205
          %s207 = sshll.u32 %s206, 4
          %s208 = int_to_ptr.hbm [resolvable:$true] %s207
          %s209 = sshll.u32 %s200, 4
          %s210 = int_to_ptr.vmem [resolvable:$true] %s209
          %215 = dma.hbm_to_vmem [thread:$0]  %s208, 512, %s210, %s197, 128, 128, 8
        $region20: #{tpu_custom_call.1} parent=15 // pred_fallthru
          _
        // Predicated region
        $region21: #{tpu_custom_call.1} parent=15 // pred_check
          %p216 = pneg %p84
        $region22: #{tpu_custom_call.1} parent=15 // pred_check_branch
          %218 = sbr.rel (%p216) target = $region24
        $region23: #{tpu_custom_call.1} parent=15 // pred_region
          %s219 = sand.u32 %s22, 1
          %s220 = scalar_lea.sflag [#allocation6], %s219
          %s221 = sand.u32 %s74, 1
          %s222 = smul.addr %s221, 32
          %s223 = scalar_lea.vmem [#allocation5], %s222
          %s224 = smul.u32 4, %s29
          %226 = vsyncadd %s220, 0
          %s227 = sadd.s32 %s30, %s224
          %s228 = smul.addr %s227, 8
          %s229 = scalar_lea.hbm %s1, %s228
          %s230 = sshll.u32 %s229, 4
          %s231 = int_to_ptr.hbm [resolvable:$true] %s230
          %s232 = sshll.u32 %s223, 4
          %s233 = int_to_ptr.vmem [resolvable:$true] %s232
          %238 = dma.hbm_to_vmem [thread:$0]  %s231, 512, %s233, %s220, 128, 128, 8
        $region24: #{tpu_custom_call.1} parent=15 // pred_fallthru
          _
        // Predicated region
        $region25: #{tpu_custom_call.1} parent=15 // pred_check
          %p239 = pneg %p112
        $region26: #{tpu_custom_call.1} parent=15 // pred_check_branch
          %241 = sbr.rel (%p239) target = $region28
        $region27: #{tpu_custom_call.1} parent=15 // pred_region
          %s242 = sand.u32 %s22, 1
          %s243 = scalar_lea.sflag [#allocation6], %s242
          %s244 = sand.u32 %s102, 1
          %s245 = smul.addr %s244, 32
          %s246 = scalar_lea.vmem [#allocation7], %s245
          %s247 = smul.u32 4, %s29
          %249 = vsyncadd %s243, 0
          %s250 = sadd.s32 %s30, %s247
          %s251 = smul.addr %s250, 8
          %s252 = scalar_lea.hbm %s2, %s251
          %s253 = sshll.u32 %s252, 4
          %s254 = int_to_ptr.hbm [resolvable:$true] %s253
          %s255 = sshll.u32 %s246, 4
          %s256 = int_to_ptr.vmem [resolvable:$true] %s255
          %261 = dma.hbm_to_vmem [thread:$0]  %s254, 512, %s256, %s243, 128, 128, 8
        $region28: #{tpu_custom_call.1} parent=15 // pred_fallthru
          _
        // Predicated region
        $region29: #{tpu_custom_call.1} parent=15 // pred_check
          %p262 = pneg %p140
        $region30: #{tpu_custom_call.1} parent=15 // pred_check_branch
          %264 = sbr.rel (%p262) target = $region32
        $region31: #{tpu_custom_call.1} parent=15 // pred_region
          %s265 = sand.u32 %s130, 1
          %s266 = scalar_lea.sflag [#allocation9], %s265
          %s267 = sand.u32 %s130, 1
          %s268 = smul.addr %s267, 32
          %s269 = scalar_lea.vmem [#allocation8], %s268
          %s270 = smul.u32 4, %s29
          %272 = vsyncadd %s266, 0
          %s273 = sadd.s32 %s30, %s270
          %s274 = smul.addr %s273, 8
          %s275 = scalar_lea.hbm %s3, %s274
          %s276 = sshll.u32 %s275, 4
          %s277 = int_to_ptr.hbm [resolvable:$true] %s276
          %s278 = sshll.u32 %s269, 4
          %s279 = int_to_ptr.vmem [resolvable:$true] %s278
          %284 = dma.hbm_to_vmem [thread:$0]  %s277, 512, %s279, %s266, 128, 128, 8
        $region32: #{tpu_custom_call.1} parent=15 // pred_fallthru
          _
      $region16: #{tpu_custom_call.1} parent=5 // pred_fallthru
        _
      %p285 = scmp.le.s32.totalorder 1, %s22
      %p286 = scmp.lt.s32.totalorder %s22, 3
      %p287 = pnand %p285, %p286
      %p288 = pneg %p287
      // Predicated region
      $region33: #{tpu_custom_call.1} parent=5 // pred_check
        _
      $region34: #{tpu_custom_call.1} parent=5 // pred_check_branch
        %290 = sbr.rel (%p287) target = $region36
      $region35: #{tpu_custom_call.1} parent=5 // pred_region
        %s291 = ssub.s32 %s22, 1
        %s292 = sand.u32 %s49, 1
        %s293 = scalar_lea.sflag [#allocation3], %s292
        %s294 = sand.u32 %s49, 1
        %s295 = smul.addr %s294, 32
        %s296 = scalar_lea.vmem [#allocation2], %s295
        // Predicated region
        $region37: #{tpu_custom_call.1} parent=35 // pred_check
          %p297 = pneg %p62
        $region38: #{tpu_custom_call.1} parent=35 // pred_check_branch
          %299 = sbr.rel (%p297) target = $region40
        $region39: #{tpu_custom_call.1} parent=35 // pred_region
          %301 = dma.done %s293, 512
        $region40: #{tpu_custom_call.1} parent=35 // pred_fallthru
          _
        %s302 = sand.u32 %s27, 1
        %s303 = scalar_lea.sflag [#allocation6], %s302
        %s304 = sand.u32 %s77, 1
        %s305 = smul.addr %s304, 32
        %s306 = scalar_lea.vmem [#allocation5], %s305
        // Predicated region
        $region41: #{tpu_custom_call.1} parent=35 // pred_check
          %p307 = pneg %p90
        $region42: #{tpu_custom_call.1} parent=35 // pred_check_branch
          %309 = sbr.rel (%p307) target = $region44
        $region43: #{tpu_custom_call.1} parent=35 // pred_region
          %311 = dma.done %s303, 512
        $region44: #{tpu_custom_call.1} parent=35 // pred_fallthru
          _
        %s312 = sand.u32 %s27, 1
        %s313 = scalar_lea.sflag [#allocation6], %s312
        %s314 = sand.u32 %s105, 1
        %s315 = smul.addr %s314, 32
        %s316 = scalar_lea.vmem [#allocation7], %s315
        // Predicated region
        $region45: #{tpu_custom_call.1} parent=35 // pred_check
          %p317 = pneg %p118
        $region46: #{tpu_custom_call.1} parent=35 // pred_check_branch
          %319 = sbr.rel (%p317) target = $region48
        $region47: #{tpu_custom_call.1} parent=35 // pred_region
          %321 = dma.done %s313, 512
        $region48: #{tpu_custom_call.1} parent=35 // pred_fallthru
          _
        %s322 = sand.u32 %s133, 1
        %s323 = scalar_lea.sflag [#allocation9], %s322
        %s324 = sand.u32 %s133, 1
        %s325 = smul.addr %s324, 32
        %s326 = scalar_lea.vmem [#allocation8], %s325
        // Predicated region
        $region49: #{tpu_custom_call.1} parent=35 // pred_check
          %p327 = pneg %p146
        $region50: #{tpu_custom_call.1} parent=35 // pred_check_branch
          %329 = sbr.rel (%p327) target = $region52
        $region51: #{tpu_custom_call.1} parent=35 // pred_region
          %331 = dma.done %s323, 512
        $region52: #{tpu_custom_call.1} parent=35 // pred_fallthru
          _
        %s332 = sand.u32 %s49, 1
        %s333 = scalar_lea.sflag [#allocation3], %s332
        %s334 = sand.u32 %s49, 1
        %s335 = smul.addr %s334, 32
        %s336 = scalar_lea.vmem [#allocation2], %s335
        %p337 = pneg %p62
        %p338 = pneg %p59
        %s339 = sand.u32 %s27, 1
        %s340 = scalar_lea.sflag [#allocation6], %s339
        %s341 = sand.u32 %s77, 1
        %s342 = smul.addr %s341, 32
        %s343 = scalar_lea.vmem [#allocation5], %s342
        %p344 = pneg %p90
        %p345 = pneg %p87
        %s346 = sand.u32 %s27, 1
        %s347 = scalar_lea.sflag [#allocation6], %s346
        %s348 = sand.u32 %s105, 1
        %s349 = smul.addr %s348, 32
        %s350 = scalar_lea.vmem [#allocation7], %s349
        %p351 = pneg %p118
        %p352 = pneg %p115
        %s353 = sand.u32 %s133, 1
        %s354 = scalar_lea.sflag [#allocation9], %s353
        %s355 = sand.u32 %s133, 1
        %s356 = smul.addr %s355, 32
        %s357 = scalar_lea.vmem [#allocation8], %s356
        %p358 = pneg %p146
        %p359 = pneg %p143
        %p360 = pneg %p174
        %p361 = pneg %p171
        %s362 = sand.u32 %s161, 1
        %s363 = scalar_lea.sflag [#allocation4], %s362
        %s364 = sand.u32 %s161, 1
        %s365 = smul.addr %s364, 40
        %s366 = scalar_lea.vmem [#allocation10], %s365
        %s367 = smul.u32 4, %s31
        %s368 = smul.u32 4, %s31
        %s369 = smul.u32 4, %s31
        %s370 = smul.u32 4, %s31
        %v371 = vld [vmem:[%s296] sm:$0xff]
        %v372 = vld [vmem:[%s296 + $0x8] sm:$0xff]
        %v373 = vld [vmem:[%s296 + $0x10] sm:$0xff]
        %v374 = vld [vmem:[%s296 + $0x18] sm:$0xff]
        %v375 = vld [vmem:[%s306] sm:$0xff]
        %v376 = vld [vmem:[%s306 + $0x8] sm:$0xff]
        %v377 = vld [vmem:[%s306 + $0x10] sm:$0xff]
        %v378 = vld [vmem:[%s306 + $0x18] sm:$0xff]
        %v379 = vld [vmem:[%s316] sm:$0xff]
        %v380 = vld [vmem:[%s316 + $0x8] sm:$0xff]
        %v381 = vld [vmem:[%s316 + $0x10] sm:$0xff]
        %v382 = vld [vmem:[%s316 + $0x18] sm:$0xff]
        %v383 = vld [vmem:[%s326] sm:$0xff]
        %v384 = vld [vmem:[%s326 + $0x8] sm:$0xff]
        %v385 = vld [vmem:[%s326 + $0x10] sm:$0xff]
        %v386 = vld [vmem:[%s326 + $0x18] sm:$0xff]
        %v387 = vadd.f32 %v371, 1e-08
        %v388 = vadd.f32 %v372, 1e-08
        %v389 = vadd.f32 %v373, 1e-08
        %v390 = vadd.f32 %v374, 1e-08
        %v391 = vrcp.pop %v387
        %v392 = vmul.f32 %v387, %v391
        %v393 = vsub.f32 1.0, %v392
        %v394 = vmul.f32 %v391, %v393
        %v395 = vadd.f32 %v391, %v394
        %vm396 = vweird.f32 %v387
        %vm397 = vweird.f32 %v391
        %vm398 = vmor %vm396, %vm397
        %v399 = vsel %vm398, %v391, %v395
        %v400 = vand.u32 2147483647, %v387
        %vm401 = vcmp.eq.f32.partialorder %v400, 8.507059e+37
        %v402 = vand.u32 %v387, 2147483648
        %v403 = vor.u32 1.1754944e-38, %v402
        %v404 = vsel %vm401, %v403, %v399
        %v405 = vmul.f32 1.0, %v404
        %v406 = vrcp.pop %v388
        %v407 = vmul.f32 %v388, %v406
        %v408 = vsub.f32 1.0, %v407
        %v409 = vmul.f32 %v406, %v408
        %v410 = vadd.f32 %v406, %v409
        %vm411 = vweird.f32 %v388
        %vm412 = vweird.f32 %v406
        %vm413 = vmor %vm411, %vm412
        %v414 = vsel %vm413, %v406, %v410
        %v415 = vand.u32 2147483647, %v388
        %vm416 = vcmp.eq.f32.partialorder %v415, 8.507059e+37
        %v417 = vand.u32 %v388, 2147483648
        %v418 = vor.u32 1.1754944e-38, %v417
        %v419 = vsel %vm416, %v418, %v414
        %v420 = vmul.f32 1.0, %v419
        %v421 = vrcp.pop %v389
        %v422 = vmul.f32 %v389, %v421
        %v423 = vsub.f32 1.0, %v422
        %v424 = vmul.f32 %v421, %v423
        %v425 = vadd.f32 %v421, %v424
        %vm426 = vweird.f32 %v389
        %vm427 = vweird.f32 %v421
        %vm428 = vmor %vm426, %vm427
        %v429 = vsel %vm428, %v421, %v425
        %v430 = vand.u32 2147483647, %v389
        %vm431 = vcmp.eq.f32.partialorder %v430, 8.507059e+37
        %v432 = vand.u32 %v389, 2147483648
        %v433 = vor.u32 1.1754944e-38, %v432
        %v434 = vsel %vm431, %v433, %v429
        %v435 = vmul.f32 1.0, %v434
        %v436 = vrcp.pop %v390
        %v437 = vmul.f32 %v390, %v436
        %v438 = vsub.f32 1.0, %v437
        %v439 = vmul.f32 %v436, %v438
        %v440 = vadd.f32 %v436, %v439
        %vm441 = vweird.f32 %v390
        %vm442 = vweird.f32 %v436
        %vm443 = vmor %vm441, %vm442
        %v444 = vsel %vm443, %v436, %v440
        %v445 = vand.u32 2147483647, %v390
        %vm446 = vcmp.eq.f32.partialorder %v445, 8.507059e+37
        %v447 = vand.u32 %v390, 2147483648
        %v448 = vor.u32 1.1754944e-38, %v447
        %v449 = vsel %vm446, %v448, %v444
        %v450 = vmul.f32 1.0, %v449
        %v451 = vmul.f32 %v375, %v405
        %v452 = vmul.f32 %v376, %v420
        %v453 = vmul.f32 %v377, %v435
        %v454 = vmul.f32 %v378, %v450
        %v455 = vsub.f32 1.0, %v451
        %v456 = vsub.f32 1.0, %v452
        %v457 = vsub.f32 1.0, %v453
        %v458 = vsub.f32 1.0, %v454
        %v459 = vmul.f32 %v451, %v405
        %v460 = vmul.f32 %v452, %v420
        %v461 = vmul.f32 %v453, %v435
        %v462 = vmul.f32 %v454, %v450
        %v463 = vmul.f32 %v379, %v455
        %v464 = vmul.f32 %v380, %v456
        %v465 = vmul.f32 %v381, %v457
        %v466 = vmul.f32 %v382, %v458
        %v467 = vmul.f32 %v383, %v455
        %v468 = vmul.f32 %v384, %v456
        %v469 = vmul.f32 %v385, %v457
        %v470 = vmul.f32 %v386, %v458
        %v471 = vmul.f32 %v379, %v459
        %v472 = vmul.f32 %v380, %v460
        %v473 = vmul.f32 %v381, %v461
        %v474 = vmul.f32 %v382, %v462
        %v475 = vmul.f32 %v379, %v471
        %v476 = vmul.f32 %v380, %v472
        %v477 = vmul.f32 %v381, %v473
        %v478 = vmul.f32 %v382, %v474
        %v479 = vmul.f32 %v383, %v471
        %v480 = vmul.f32 %v384, %v472
        %v481 = vmul.f32 %v385, %v473
        %v482 = vmul.f32 %v386, %v474
        %v483 = vmul.f32 %v383, %v459
        %v484 = vmul.f32 %v384, %v460
        %v485 = vmul.f32 %v385, %v461
        %v486 = vmul.f32 %v386, %v462
        %v487 = vmul.f32 %v383, %v483
        %v488 = vmul.f32 %v384, %v484
        %v489 = vmul.f32 %v385, %v485
        %v490 = vmul.f32 %v386, %v486
        %v491 = vadd.f32 %v463, %v464
        %v492 = vadd.f32 %v491, %v465
        %v493 = vadd.f32 %v492, %v466
        %v494 = vadd.f32 %v493, 0.0
        %v495 = vadd.f32 %v467, %v468
        %v496 = vadd.f32 %v495, %v469
        %v497 = vadd.f32 %v496, %v470
        %v498 = vadd.f32 %v497, 0.0
        %v499 = vadd.f32 %v475, %v476
        %v500 = vadd.f32 %v499, %v477
        %v501 = vadd.f32 %v500, %v478
        %v502 = vadd.f32 %v501, 0.0
        %v503 = vadd.f32 %v479, %v480
        %v504 = vadd.f32 %v503, %v481
        %v505 = vadd.f32 %v504, %v482
        %v506 = vadd.f32 %v505, 0.0
        %v507 = vadd.f32 %v487, %v488
        %v508 = vadd.f32 %v507, %v489
        %v509 = vadd.f32 %v508, %v490
        %v510 = vadd.f32 %v509, 0.0
        %511 = vst [vmem:[%s366] sm:$0xff] %v494
        %512 = vst [vmem:[%s366 + $0x8] sm:$0xff] %v498
        %513 = vst [vmem:[%s366 + $0x10] sm:$0xff] %v502
        %514 = vst [vmem:[%s366 + $0x18] sm:$0xff] %v506
        %515 = vst [vmem:[%s366 + $0x20] sm:$0xff] %v510
        %s516 = sand.u32 %s161, 1
        %s517 = scalar_lea.sflag [#allocation4], %s516
        %s518 = sand.u32 %s161, 1
        %s519 = smul.addr %s518, 40
        %s520 = scalar_lea.vmem [#allocation10], %s519
        // Predicated region
        $region53: #{tpu_custom_call.1} parent=35 // pred_check
          %p521 = pneg %p171
        $region54: #{tpu_custom_call.1} parent=35 // pred_check_branch
          %523 = sbr.rel (%p521) target = $region56
        $region55: #{tpu_custom_call.1} parent=35 // pred_region
          %525 = vsyncadd %s517, 0
          %s526 = smul.addr %s32, 5
          %s527 = smul.addr %s31, 5
          %s528 = sadd.s32 %s526, %s527
          %s529 = smul.addr %s528, 8
          %s530 = scalar_lea.hbm %s4, %s529
          %s531 = sshll.u32 %s520, 4
          %s532 = int_to_ptr.vmem [resolvable:$true] %s531
          %s533 = sshll.u32 %s530, 4
          %s534 = int_to_ptr.hbm [resolvable:$true] %s533
          %539 = dma.vmem_to_hbm [thread:$0]  %s532, 640, %s534, %s517, 128, 128, 8
        $region56: #{tpu_custom_call.1} parent=35 // pred_fallthru
          _
      $region36: #{tpu_custom_call.1} parent=5 // pred_fallthru
        _
      %p540 = scmp.le.s32.totalorder 2, %s22
      // Predicated region
      $region57: #{tpu_custom_call.1} parent=5 // pred_check
        %p541 = pneg %p540
      $region58: #{tpu_custom_call.1} parent=5 // pred_check_branch
        %543 = sbr.rel (%p541) target = $region60
      $region59: #{tpu_custom_call.1} parent=5 // pred_region
        %s544 = ssub.s32 %s22, 2
        // Predicated region
        $region61: #{tpu_custom_call.1} parent=59 // pred_check
          %p545 = pneg %p177
        $region62: #{tpu_custom_call.1} parent=59 // pred_check_branch
          %547 = sbr.rel (%p545) target = $region64
        $region63: #{tpu_custom_call.1} parent=59 // pred_region
          %s548 = sand.u32 %s162, 1
          %s549 = scalar_lea.sflag [#allocation4], %s548
          %s550 = sand.u32 %s162, 1
          %s551 = smul.addr %s550, 40
          %s552 = scalar_lea.vmem [#allocation10], %s551
          %554 = dma.done %s549, 640
        $region64: #{tpu_custom_call.1} parent=59 // pred_fallthru
          _
      $region60: #{tpu_custom_call.1} parent=5 // pred_fallthru
        _
    $region6: #{tpu_custom_call.1} parent=1 // loop_footer
      %s26 = sadd.s32 1, %s22
    $region7: #{tpu_custom_call.1} parent=1 // loop_footer_branch
      %21 = sbr.rel target = $region3
    $region8: #{tpu_custom_call.1} parent=1 // loop_exit
      _
    %555 = vsyncpa [#allocation3], 1
    %s556 = scalar_lea.sflag [#allocation3], 1
    %557 = vsyncpa %s556, 1
    %558 = vsyncpa [#allocation6], 1
    %s559 = scalar_lea.sflag [#allocation6], 1
    %560 = vsyncpa %s559, 1
    %561 = vsyncpa [#allocation9], 1
    %s562 = scalar_lea.sflag [#allocation9], 1
    %563 = vsyncpa %s562, 1
    %564 = vsyncpa [#allocation4], 1
    %s565 = scalar_lea.sflag [#allocation4], 1
    %566 = vsyncpa %s565, 1

</llo_original>
